<compile_context>
chip_gen: v6e
topology: v6e:2x2x1
jax: 0.10.0
libtpu: 0.0.40
codegen_flags: <defaults>
</compile_context>

<pallas_src>
import functools

import jax
import jax.numpy as jnp
from jax.experimental import pallas as pl
from jax.experimental.pallas import tpu as pltpu


def _ft_loss_kernel(teacher_ref, student_ref, logits_ref, labels_ref,
                    out_ref, l1_acc, ce_acc, *, n_rows):
    c = pl.program_id(0)            # core / batch-half axis ("parallel")
    i = pl.program_id(1)            # streaming reduction axis ("arbitrary")
    tpc = pl.num_programs(1)        # tiles per core

    @pl.when(i == 0)
    def _init():
        l1_acc[...] = jnp.zeros_like(l1_acc)
        ce_acc[...] = jnp.zeros_like(ce_acc)

    # ---- Factor-transfer L1 partial sum -------------------------------------
    t = teacher_ref[...].astype(jnp.float32)               # (TN, D)
    s = student_ref[...].astype(jnp.float32)                # (TN, D)
    tn, d = t.shape

    # Logical (unclamped) row ids mask both the padded tail of the last real
    # tile and any fully-out-of-range tiles on the second core.
    row0 = (c * tpc + i) * tn
    row_ids = row0 + jax.lax.broadcasted_iota(jnp.int32, (tn, 1), 0)
    valid = row_ids < n_rows

    # F.normalize: x / max(||x||, eps)  ->  rsqrt(max(sum(x*x), eps^2))  (EUP)
    eps2 = jnp.float32(1e-24)                                # (1e-12)**2
    t_inv = jax.lax.rsqrt(jnp.maximum(jnp.sum(t * t, axis=-1, keepdims=True), eps2))
    s_inv = jax.lax.rsqrt(jnp.maximum(jnp.sum(s * s, axis=-1, keepdims=True), eps2))
    row_l1 = jnp.sum(jnp.abs(s * s_inv - t * t_inv), axis=-1, keepdims=True)  # (TN,1)
    l1_acc[...] += jnp.sum(jnp.where(valid, row_l1, 0.0), axis=0, keepdims=True)

    # ---- Cross-entropy partial sum ------------------------------------------
    logits = logits_ref[...].astype(jnp.float32)             # (TN, C)
    labels = labels_ref[...]                                 # (TN, 1) int32
    ncls = logits.shape[-1]
    m = jnp.max(logits, axis=-1, keepdims=True)
    z = logits - m
    lse = jnp.log(jnp.sum(jnp.exp(z), axis=-1, keepdims=True))
    classes = jax.lax.broadcasted_iota(jnp.int32, (tn, ncls), 1)
    picked = jnp.sum(jnp.where(classes == labels, z, 0.0), axis=-1, keepdims=True)
    row_nll = lse - picked                                   # -log_softmax[label]
    ce_acc[...] += jnp.sum(jnp.where(valid, row_nll, 0.0), axis=0, keepdims=True)

    # ---- Finalize: write this core's partial sums once, on its last step ----
    @pl.when(i == tpc - 1)
    def _finalize():
        rr = jax.lax.broadcasted_iota(jnp.int32, (8, 128), 0)
        cc = jax.lax.broadcasted_iota(jnp.int32, (8, 128), 1)
        slab = jnp.where((rr == 0) & (cc == 0), ce_acc[0, 0],
                         jnp.where((rr == 0) & (cc == 1), l1_acc[0, 0],
                                   jnp.float32(0.0)))
        out_ref[...] = slab.reshape(out_ref.shape)


def _vmem_plan():
    """Per-generation (factor block target bytes, scoped-VMEM cap bytes)."""
    try:
        kind = jax.devices()[0].device_kind.lower()
    except Exception:  # pragma: no cover
        kind = ""
    if ("v5" in kind) or ("v6" in kind):
        # 128 MiB physical VMEM parts: push toward the ~85% HBM-roofline plateau.
        return 8 * 1024 * 1024, 96 * 1024 * 1024
    # v7x (64 MiB VMEM per TC) or unknown: conservative.
    return 4 * 1024 * 1024, 48 * 1024 * 1024


def _vmem_estimate(tn, d, itemsize, ncls, logits_itemsize):
    factor_block = tn * d * itemsize
    logits_block = tn * ncls * logits_itemsize
    labels_block = tn * 4
    return int(2 * 2 * factor_block                 # teacher+student, double-buffered
               + 2 * (logits_block + labels_block)  # logits+labels, double-buffered
               + 6 * tn * d * 4                     # in-kernel f32 upcasts / temps
               + (2 << 20))                         # output slab, scratch, slack


def _choose_tile(n, d, itemsize, target_block_bytes, sub):
    """Balanced batch-tile rows (multiple of `sub`) targeting target_block_bytes."""
    if n <= sub:
        return n, 1
    row_bytes = max(d * itemsize, 1)
    tn_max = max(sub, min(1024, target_block_bytes // row_bytes))
    tn_max = max(sub, (tn_max // sub) * sub)
    if tn_max >= n:
        return n, 1
    num_tiles = pl.cdiv(n, tn_max)
    tn = pl.cdiv(n, num_tiles)                 # balance tiles (no ~empty tail tile)
    tn = ((tn + sub - 1) // sub) * sub         # sublane-pack aligned (<= tn_max)
    num_tiles = pl.cdiv(n, tn)
    return tn, num_tiles


def factor_transfer_loss(factor_teacher, factor_student, logits, labels, beta):
    """factor_*: (N, C, H, W) float (f32/bf16); logits: (N, K); labels: (N,) int."""
    n = factor_teacher.shape[0]
    t2d = factor_teacher.reshape(n, -1)        # x.view(N, -1); keep native dtype
    s2d = factor_student.reshape(n, -1)
    d = t2d.shape[1]
    num_classes = logits.shape[-1]
    labels2d = labels.astype(jnp.int32).reshape(n, 1)

    itemsize = jnp.dtype(t2d.dtype).itemsize
    logits_itemsize = jnp.dtype(logits.dtype).itemsize
    sub = {1: 32, 2: 16}.get(itemsize, 8)      # dtype-aware sublane packing multiple

    target_block_bytes, vmem_cap = _vmem_plan()
    tn, num_tiles = _choose_tile(n, d, itemsize, target_block_bytes, sub)
    # Safety: shrink tiles if the estimated working set overshoots the budget.
    while (_vmem_estimate(tn, d, itemsize, num_classes, logits_itemsize) > vmem_cap
           and tn > sub):
        tn = max(sub, ((tn // 2) // sub) * sub)
        num_tiles = pl.cdiv(n, tn)

    tiles_per_core = pl.cdiv(num_tiles, 2)
    grid = (2, tiles_per_core)                 # (core split "parallel", reduce "arbitrary")

    def blk_map(c, i):
        # Clamp so the DMA never walks past the array; fully-out-of-range
        # logical tiles are masked to zero contribution inside the kernel.
        return (jnp.minimum(c * tiles_per_core + i, num_tiles - 1), 0)

    vmem_limit = int(min(vmem_cap,
                         max(32 * 1024 * 1024,
                             _vmem_estimate(tn, d, itemsize, num_classes,
                                            logits_itemsize))))

    kernel = functools.partial(_ft_loss_kernel, n_rows=n)
    out = pl.pallas_call(
        kernel,
        out_shape=jax.ShapeDtypeStruct((2, 8, 128), jnp.float32),
        grid=grid,
        in_specs=[
            pl.BlockSpec((tn, d), blk_map),                     # teacher (native dtype)
            pl.BlockSpec((tn, d), blk_map),                     # student (native dtype)
            pl.BlockSpec((tn, num_classes), blk_map),           # logits
            pl.BlockSpec((tn, 1), blk_map),                     # labels
        ],
        out_specs=pl.BlockSpec((1, 8, 128), lambda c, i: (c, 0, 0)),
        scratch_shapes=[pltpu.VMEM((1, 1), jnp.float32),        # per-core L1 sum
                        pltpu.VMEM((1, 1), jnp.float32)],       # per-core CE sum
        compiler_params=pltpu.CompilerParams(
            dimension_semantics=("parallel", "arbitrary"),
            vmem_limit_bytes=vmem_limit),
    )(t2d, s2d, logits, labels2d)

    # Combine the two per-core partial sums (scalar epilogue; beta stays here,
    # so sweeping beta never recompiles the kernel).
    ce_sum = out[0, 0, 0] + out[1, 0, 0]
    l1_sum = out[0, 0, 1] + out[1, 0, 1]
    return ce_sum / n + beta * (l1_sum / (n * d))


def _reference(factor_teacher, factor_student, logits, labels, beta):
    n = factor_teacher.shape[0]

    def ft(x):
        x = x.reshape(n, -1).astype(jnp.float32)
        nrm = jnp.sqrt(jnp.sum(x * x, axis=-1, keepdims=True))
        return x / jnp.maximum(nrm, 1e-12)

    logp = jax.nn.log_softmax(logits.astype(jnp.float32), axis=-1)
    ce = jnp.mean(-jnp.take_along_axis(logp, labels[:, None].astype(jnp.int32),
                                       axis=-1)[:, 0])
    l1 = jnp.mean(jnp.abs(ft(factor_student) - ft(factor_teacher)))
    return ce + beta * l1


if __name__ == "__main__":
    key = jax.random.PRNGKey(0)
    k1, k2, k3, k4 = jax.random.split(key, 4)

    N, C, H, W = 2, 4, 8, 8      # factor maps (NCHW)
    NUM_CLASSES = 10
    BETA = 500.0                 # typical factor-transfer beta

    factor_teacher = jax.random.normal(k1, (N, C, H, W), dtype=jnp.float32)
    factor_student = jax.random.normal(k2, (N, C, H, W), dtype=jnp.float32)
    logits = jax.random.normal(k3, (N, NUM_CLASSES), dtype=jnp.float32)
    labels = jax.random.randint(k4, (N,), 0, NUM_CLASSES, dtype=jnp.int32)

    loss = factor_transfer_loss(factor_teacher, factor_student, logits, labels, BETA)
    loss = jax.block_until_ready(loss)

    ref = _reference(factor_teacher, factor_student, logits, labels, BETA)
    assert jnp.allclose(loss, ref, rtol=1e-4, atol=1e-5), (loss, ref)

    print("KERNEL_OK")
</pallas_src>

<mosaic_0001>
module attributes {stable_mosaic.version = 11 : i64} {
  func.func @_ft_loss_kernel(%arg0: i32, %arg1: i32, %arg2: memref<2x256xf32, #tpu.memory_space<vmem>>, %arg3: memref<2x256xf32, #tpu.memory_space<vmem>>, %arg4: memref<2x10xf32, #tpu.memory_space<vmem>>, %arg5: memref<2x1xi32, #tpu.memory_space<vmem>>, %arg6: memref<1x8x128xf32, #tpu.memory_space<vmem>>, %arg7: memref<1x1xf32, #tpu.memory_space<vmem>>, %arg8: memref<1x1xf32, #tpu.memory_space<vmem>>) attributes {dimension_semantics = [#tpu.dimension_semantics<parallel>, #tpu.dimension_semantics<arbitrary>], iteration_bounds = array<i64: 2, 1>, scalar_prefetch = 0 : i64, scratch_operands = 2 : i64, tpu.core_type = #tpu.core_type<tc>, window_params = [{transform_indices = @transform_0, window_bounds = array<i64: 2, 256>}, {transform_indices = @transform_1, window_bounds = array<i64: 2, 256>}, {transform_indices = @transform_2, window_bounds = array<i64: 2, 10>}, {transform_indices = @transform_3, window_bounds = array<i64: 2, 1>}, {transform_indices = @transform_4, window_bounds = array<i64: 1, 8, 128>}]} {
    %c0_i32 = arith.constant 0 : i32
    %0 = arith.cmpi eq, %arg1, %c0_i32 : i32
    %1 = arith.extui %0 : i1 to i32
    %c0_i32_0 = arith.constant 0 : i32
    %2 = arith.cmpi ne, %1, %c0_i32_0 : i32
    scf.if %2 {
      %cst_31 = arith.constant 0.000000e+00 : f32
      %68 = vector.broadcast %cst_31 : f32 to vector<1x1xf32>
      %c0_32 = arith.constant 0 : index
      %c0_33 = arith.constant 0 : index
      %69 = vector.load %arg7[%c0_32, %c0_33] : memref<1x1xf32, #tpu.memory_space<vmem>>, vector<1x1xf32>
      tpu.vector_store %arg7[%c0_32, %c0_33], %68 {strides = array<i32>} : memref<1x1xf32, #tpu.memory_space<vmem>>, vector<1x1xf32>,
      %cst_34 = arith.constant 0.000000e+00 : f32
      %70 = vector.broadcast %cst_34 : f32 to vector<1x1xf32>
      %c0_35 = arith.constant 0 : index
      %c0_36 = arith.constant 0 : index
      %71 = vector.load %arg8[%c0_35, %c0_36] : memref<1x1xf32, #tpu.memory_space<vmem>>, vector<1x1xf32>
      tpu.vector_store %arg8[%c0_35, %c0_36], %70 {strides = array<i32>} : memref<1x1xf32, #tpu.memory_space<vmem>>, vector<1x1xf32>,
    } else {
    }
    %c0 = arith.constant 0 : index
    %c0_1 = arith.constant 0 : index
    %3 = vector.load %arg2[%c0, %c0_1] : memref<2x256xf32, #tpu.memory_space<vmem>>, vector<2x256xf32>
    %c0_2 = arith.constant 0 : index
    %c0_3 = arith.constant 0 : index
    %4 = vector.load %arg3[%c0_2, %c0_3] : memref<2x256xf32, #tpu.memory_space<vmem>>, vector<2x256xf32>
    %c1_i32 = arith.constant 1 : i32
    %5 = arith.muli %arg0, %c1_i32 : i32
    %6 = arith.addi %5, %arg1 : i32
    %c2_i32 = arith.constant 2 : i32
    %7 = arith.muli %6, %c2_i32 : i32
    %8 = tpu.iota {dimensions = array<i32: 0>} : vector<2x1xi32>
    %9 = vector.broadcast %7 : i32 to vector<2x1xi32>
    %10 = arith.addi %9, %8 : vector<2x1xi32>
    %c2_i32_4 = arith.constant 2 : i32
    %11 = vector.broadcast %c2_i32_4 : i32 to vector<2x1xi32>
    %12 = arith.cmpi slt, %10, %11 : vector<2x1xi32>
    %13 = arith.mulf %3, %3 : vector<2x256xf32>
    %cst = arith.constant dense<0.000000e+00> : vector<2xf32>
    %14 = vector.multi_reduction <add>, %13, %cst [1] : vector<2x256xf32> to vector<2xf32>
    %15 = vector.shape_cast %14 : vector<2xf32> to vector<2x1xf32>
    %cst_5 = arith.constant 1.000000e-24 : f32
    %16 = vector.broadcast %cst_5 : f32 to vector<2x1xf32>
    %17 = arith.maximumf %15, %16 : vector<2x1xf32>
    %18 = math.rsqrt %17 : vector<2x1xf32>
    %19 = arith.mulf %4, %4 : vector<2x256xf32>
    %cst_6 = arith.constant dense<0.000000e+00> : vector<2xf32>
    %20 = vector.multi_reduction <add>, %19, %cst_6 [1] : vector<2x256xf32> to vector<2xf32>
    %21 = vector.shape_cast %20 : vector<2xf32> to vector<2x1xf32>
    %cst_7 = arith.constant 1.000000e-24 : f32
    %22 = vector.broadcast %cst_7 : f32 to vector<2x1xf32>
    %23 = arith.maximumf %21, %22 : vector<2x1xf32>
    %24 = math.rsqrt %23 : vector<2x1xf32>
    %25 = vector.broadcast %24 : vector<2x1xf32> to vector<2x256xf32>
    %26 = arith.mulf %4, %25 : vector<2x256xf32>
    %27 = vector.broadcast %18 : vector<2x1xf32> to vector<2x256xf32>
    %28 = arith.mulf %3, %27 : vector<2x256xf32>
    %29 = arith.subf %26, %28 : vector<2x256xf32>
    %30 = math.absf %29 : vector<2x256xf32>
    %cst_8 = arith.constant dense<0.000000e+00> : vector<2xf32>
    %31 = vector.multi_reduction <add>, %30, %cst_8 [1] : vector<2x256xf32> to vector<2xf32>
    %32 = vector.shape_cast %31 : vector<2xf32> to vector<2x1xf32>
    %c0_9 = arith.constant 0 : index
    %c0_10 = arith.constant 0 : index
    %33 = vector.load %arg7[%c0_9, %c0_10] : memref<1x1xf32, #tpu.memory_space<vmem>>, vector<1x1xf32>
    %cst_11 = arith.constant 0.000000e+00 : f32
    %34 = vector.broadcast %cst_11 : f32 to vector<2x1xf32>
    %35 = arith.select %12, %32, %34 : vector<2x1xi1>, vector<2x1xf32>
    %cst_12 = arith.constant dense<0.000000e+00> : vector<1xf32>
    %36 = vector.multi_reduction <add>, %35, %cst_12 [0] : vector<2x1xf32> to vector<1xf32>
    %37 = vector.shape_cast %36 : vector<1xf32> to vector<1x1xf32>
    %38 = arith.addf %33, %37 : vector<1x1xf32>
    %c0_13 = arith.constant 0 : index
    %c0_14 = arith.constant 0 : index
    %39 = vector.load %arg7[%c0_13, %c0_14] : memref<1x1xf32, #tpu.memory_space<vmem>>, vector<1x1xf32>
    tpu.vector_store %arg7[%c0_13, %c0_14], %38 {strides = array<i32>} : memref<1x1xf32, #tpu.memory_space<vmem>>, vector<1x1xf32>,
    %c0_15 = arith.constant 0 : index
    %c0_16 = arith.constant 0 : index
    %40 = vector.load %arg4[%c0_15, %c0_16] : memref<2x10xf32, #tpu.memory_space<vmem>>, vector<2x10xf32>
    %c0_17 = arith.constant 0 : index
    %c0_18 = arith.constant 0 : index
    %41 = vector.load %arg5[%c0_17, %c0_18] : memref<2x1xi32, #tpu.memory_space<vmem>>, vector<2x1xi32>
    %cst_19 = arith.constant dense<0xFF800000> : vector<2xf32>
    %42 = vector.multi_reduction <maximumf>, %40, %cst_19 [1] : vector<2x10xf32> to vector<2xf32>
    %43 = vector.shape_cast %42 : vector<2xf32> to vector<2x1xf32>
    %44 = vector.broadcast %43 : vector<2x1xf32> to vector<2x10xf32>
    %45 = arith.subf %40, %44 : vector<2x10xf32>
    %46 = math.exp %45 : vector<2x10xf32>
    %cst_20 = arith.constant dense<0.000000e+00> : vector<2xf32>
    %47 = vector.multi_reduction <add>, %46, %cst_20 [1] : vector<2x10xf32> to vector<2xf32>
    %48 = vector.shape_cast %47 : vector<2xf32> to vector<2x1xf32>
    %49 = math.log %48 : vector<2x1xf32>
    %50 = tpu.iota {dimensions = array<i32: 1>} : vector<2x10xi32>
    %51 = vector.broadcast %41 : vector<2x1xi32> to vector<2x10xi32>
    %52 = arith.cmpi eq, %50, %51 : vector<2x10xi32>
    %cst_21 = arith.constant 0.000000e+00 : f32
    %53 = vector.broadcast %cst_21 : f32 to vector<2x10xf32>
    %54 = arith.select %52, %45, %53 : vector<2x10xi1>, vector<2x10xf32>
    %cst_22 = arith.constant dense<0.000000e+00> : vector<2xf32>
    %55 = vector.multi_reduction <add>, %54, %cst_22 [1] : vector<2x10xf32> to vector<2xf32>
    %56 = vector.shape_cast %55 : vector<2xf32> to vector<2x1xf32>
    %57 = arith.subf %49, %56 : vector<2x1xf32>
    %c0_23 = arith.constant 0 : index
    %c0_24 = arith.constant 0 : index
    %58 = vector.load %arg8[%c0_23, %c0_24] : memref<1x1xf32, #tpu.memory_space<vmem>>, vector<1x1xf32>
    %cst_25 = arith.constant 0.000000e+00 : f32
    %59 = vector.broadcast %cst_25 : f32 to vector<2x1xf32>
    %60 = arith.select %12, %57, %59 : vector<2x1xi1>, vector<2x1xf32>
    %cst_26 = arith.constant dense<0.000000e+00> : vector<1xf32>
    %61 = vector.multi_reduction <add>, %60, %cst_26 [0] : vector<2x1xf32> to vector<1xf32>
    %62 = vector.shape_cast %61 : vector<1xf32> to vector<1x1xf32>
    %63 = arith.addf %58, %62 : vector<1x1xf32>
    %c0_27 = arith.constant 0 : index
    %c0_28 = arith.constant 0 : index
    %64 = vector.load %arg8[%c0_27, %c0_28] : memref<1x1xf32, #tpu.memory_space<vmem>>, vector<1x1xf32>
    tpu.vector_store %arg8[%c0_27, %c0_28], %63 {strides = array<i32>} : memref<1x1xf32, #tpu.memory_space<vmem>>, vector<1x1xf32>,
    %c0_i32_29 = arith.constant 0 : i32
    %65 = arith.cmpi eq, %arg1, %c0_i32_29 : i32
    %66 = arith.extui %65 : i1 to i32
    %c0_i32_30 = arith.constant 0 : i32
    %67 = arith.cmpi ne, %66, %c0_i32_30 : i32
    scf.if %67 {
      %68 = tpu.iota {dimensions = array<i32: 0>} : vector<8x128xi32>
      %69 = tpu.iota {dimensions = array<i32: 1>} : vector<8x128xi32>
      %c0_i32_31 = arith.constant 0 : i32
      %70 = vector.broadcast %c0_i32_31 : i32 to vector<8x128xi32>
      %71 = arith.cmpi eq, %68, %70 : vector<8x128xi32>
      %c0_i32_32 = arith.constant 0 : i32
      %72 = vector.broadcast %c0_i32_32 : i32 to vector<8x128xi32>
      %73 = arith.cmpi eq, %69, %72 : vector<8x128xi32>
      %74 = arith.andi %71, %73 : vector<8x128xi1>
      %c0_33 = arith.constant 0 : index
      %c0_34 = arith.constant 0 : index
      %75 = vector.load %arg8[%c0_33, %c0_34] : memref<1x1xf32, #tpu.memory_space<vmem>>, vector<1x1xf32>
      %76 = vector.extract %75[0, 0] : f32 from vector<1x1xf32>
      %c0_i32_35 = arith.constant 0 : i32
      %77 = vector.broadcast %c0_i32_35 : i32 to vector<8x128xi32>
      %78 = arith.cmpi eq, %68, %77 : vector<8x128xi32>
      %c1_i32_36 = arith.constant 1 : i32
      %79 = vector.broadcast %c1_i32_36 : i32 to vector<8x128xi32>
      %80 = arith.cmpi eq, %69, %79 : vector<8x128xi32>
      %81 = arith.andi %78, %80 : vector<8x128xi1>
      %c0_37 = arith.constant 0 : index
      %c0_38 = arith.constant 0 : index
      %82 = vector.load %arg7[%c0_37, %c0_38] : memref<1x1xf32, #tpu.memory_space<vmem>>, vector<1x1xf32>
      %83 = vector.extract %82[0, 0] : f32 from vector<1x1xf32>
      %cst_39 = arith.constant 0.000000e+00 : f32
      %84 = vector.broadcast %83 : f32 to vector<8x128xf32>
      %85 = vector.broadcast %cst_39 : f32 to vector<8x128xf32>
      %86 = arith.select %81, %84, %85 : vector<8x128xi1>, vector<8x128xf32>
      %87 = vector.broadcast %76 : f32 to vector<8x128xf32>
      %88 = arith.select %74, %87, %86 : vector<8x128xi1>, vector<8x128xf32>
      %89 = vector.shape_cast %88 : vector<8x128xf32> to vector<1x8x128xf32>
      %c0_40 = arith.constant 0 : index
      %c0_41 = arith.constant 0 : index
      %c0_42 = arith.constant 0 : index
      %90 = vector.load %arg6[%c0_40, %c0_41, %c0_42] : memref<1x8x128xf32, #tpu.memory_space<vmem>>, vector<1x8x128xf32>
      tpu.vector_store %arg6[%c0_40, %c0_41, %c0_42], %89 {strides = array<i32>} : memref<1x8x128xf32, #tpu.memory_space<vmem>>, vector<1x8x128xf32>,
    } else {
    }
    return
  }
  func.func @transform_0(%arg0: i32, %arg1: i32) -> (i32, i32) {
    %c1_i32 = arith.constant 1 : i32
    %0 = arith.muli %arg0, %c1_i32 : i32
    %1 = arith.addi %0, %arg1 : i32
    %c0_i32 = arith.constant 0 : i32
    %2 = arith.minsi %1, %c0_i32 : i32
    %c0_i32_0 = arith.constant 0 : i32
    %c0_i32_1 = arith.constant 0 : i32
    return %2, %c0_i32_0 : i32, i32
  }
  func.func @transform_1(%arg0: i32, %arg1: i32) -> (i32, i32) {
    %c1_i32 = arith.constant 1 : i32
    %0 = arith.muli %arg0, %c1_i32 : i32
    %1 = arith.addi %0, %arg1 : i32
    %c0_i32 = arith.constant 0 : i32
    %2 = arith.minsi %1, %c0_i32 : i32
    %c0_i32_0 = arith.constant 0 : i32
    %c0_i32_1 = arith.constant 0 : i32
    return %2, %c0_i32_0 : i32, i32
  }
  func.func @transform_2(%arg0: i32, %arg1: i32) -> (i32, i32) {
    %c1_i32 = arith.constant 1 : i32
    %0 = arith.muli %arg0, %c1_i32 : i32
    %1 = arith.addi %0, %arg1 : i32
    %c0_i32 = arith.constant 0 : i32
    %2 = arith.minsi %1, %c0_i32 : i32
    %c0_i32_0 = arith.constant 0 : i32
    %c0_i32_1 = arith.constant 0 : i32
    return %2, %c0_i32_0 : i32, i32
  }
  func.func @transform_3(%arg0: i32, %arg1: i32) -> (i32, i32) {
    %c1_i32 = arith.constant 1 : i32
    %0 = arith.muli %arg0, %c1_i32 : i32
    %1 = arith.addi %0, %arg1 : i32
    %c0_i32 = arith.constant 0 : i32
    %2 = arith.minsi %1, %c0_i32 : i32
    %c0_i32_0 = arith.constant 0 : i32
    %c0_i32_1 = arith.constant 0 : i32
    return %2, %c0_i32_0 : i32, i32
  }
  func.func @transform_4(%arg0: i32, %arg1: i32) -> (i32, i32, i32) {
    %c0_i32 = arith.constant 0 : i32
    %c0_i32_0 = arith.constant 0 : i32
    %c0_i32_1 = arith.constant 0 : i32
    return %arg0, %c0_i32, %c0_i32_0 : i32, i32, i32
  }
}

</mosaic_0001>

<llo_original>
// kernel: tpu_custom_call.1
$region0: #{tpu_custom_call.1}
  #allocation0 [shape = 'u32[]', space=smem, size = 0x4, offset = 0x4, fixed_abs, tag = 'smem constant byte address 0x4 - core index']
  #allocation1 [shape = 'u32[144,128]{1,0:T(1,128)}', space=vmem, size = 0x12000, scoped, tag = 'internal scratch']
  #allocation2 [shape = 'f32[1,1]{1,0:T(1,128)}', space=vmem, size = 0x200, scoped, tag = 'scratch operand']
  #allocation3 [shape = 'f32[1,1]{1,0:T(1,128)}', space=vmem, size = 0x200, scoped, tag = 'scratch operand']
  %s0 = inlined_call_operand.hbm [shape: f32[2,256], index: 0, kind: input, shape index: {}]
  %s1 = inlined_call_operand.vmem [shape: f32[2,256], index: 1, kind: input, shape index: {}]
  %s2 = inlined_call_operand.vmem [shape: f32[2,10], index: 2, kind: input, shape index: {}]
  %s3 = inlined_call_operand.vmem [shape: s32[2,1], index: 3, kind: input, shape index: {}]
  %s4 = inlined_call_operand.hbm [shape: f32[2,8,128], index: 4, kind: output, shape index: {}]
  %s5 = sld [smem:[#allocation0]]
  $region61: #{tpu_custom_call.1} parent=0
    _
  %s7 = ssub.s32 1, %s5
  %s8 = scalar_select 0, %s7, %s5
  $region1: #{tpu_custom_call.1} parent=0
    #allocation4 [shape = 'u8[4096]{0}', space=vmem, size = 0x1000, scoped, tag = 'input window, operand 0']
    #allocation5 [shape = 's32[2]{0}', space=sflag, size = 0x8, scoped, tag = 'scoped memory for tpu_custom_call.1']
    #allocation6 [shape = 's32[2]{0}', space=sflag, size = 0x8, scoped, tag = 'scoped memory for tpu_custom_call.1']
    #allocation7 [shape = 'u8[8192]{0}', space=vmem, size = 0x2000, scoped, tag = 'output window, operand 0']
    %9 = vsyncpa [#allocation5], 0
    %s10 = scalar_lea.sflag [#allocation5], 1
    %11 = vsyncpa %s10, 0
    %12 = vsyncpa [#allocation6], 0
    %s13 = scalar_lea.sflag [#allocation6], 1
    %14 = vsyncpa %s13, 0
    loop: start=0, step=1, limit=4
    $region2: #{tpu_custom_call.1} parent=1 // loop_pre_header
      _
    $region3: #{tpu_custom_call.1} parent=1 // loop_header
      %s16 = sphi 0, %s20
      %p17 = scmp.ge.s32.totalorder %s16, 4
      %s23 = sphi 0, %s35
      %s24 = sphi 0, %s31
      %s25 = sphi 0, %s23
      %s26 = sphi 0, %s24
      %s27 = sphi 0, %s25
      %s28 = sphi 0, %s26
      %s44 = sphi 0, %s46
      %s47 = sphi 0, %s44
      %s48 = sphi 0, %s47
      %s64 = sphi 0, %s48
      %s76 = sphi 0, %s78
      %s79 = sphi 0, %s76
      %s80 = sphi 0, %s79
      %s96 = sphi 0, %s80
      %s108 = sphi 0, %s110
      %s111 = sphi 0, %s108
      %s112 = sphi 0, %s111
      %s128 = sphi 0, %s112
      %s140 = sphi 0, %s142
      %s143 = sphi 0, %s140
      %s144 = sphi 0, %s143
      %s160 = sphi 0, %s144
      %s166 = sphi 0, %s168
      %s169 = sphi 0, %s166
      %s170 = sphi 0, %s169
      %s186 = sphi 0, %s170
    $region4: #{tpu_custom_call.1} parent=1 // loop_header_branch
      %19 = sbr.rel (%p17) target = $region8
    $region5: #{tpu_custom_call.1} parent=1 // loop_body
      %s21 = ssub.s32 %s16, 1
      %s22 = ssub.s32 %s16, 2
      %s29 = sadd.s32 1, %s24
      %p30 = scmp.ge.s32.totalorder %s29, 1
      %s31 = scalar_select %p30, 0, %s29
      %s32 = sadd.s32 1, %s23
      %s33 = scalar_select %p30, %s32, %s23
      %p34 = scmp.ge.s32.totalorder %s33, 2
      %s35 = scalar_select %p34, 0, %s33
      %s36 = sadd.s32 %s23, %s24
      %p37 = scmp.lt.s32.totalorder %s36, 0
      %s38 = scalar_select %p37, %s36, 0
      %s39 = sadd.s32 %s35, %s31
      %p40 = scmp.lt.s32.totalorder %s39, 0
      %s41 = scalar_select %p40, %s39, 0
      %s42 = ssub.s32 %s38, %s41
      %p43 = scmp.eq.s32.totalorder %s42, 0
      %s45 = sadd.s32 %s44, 1
      %s46 = scalar_select %p43, %s44, %s45
      %p49 = pneg %p43
      %p50 = scmp.eq.s32.totalorder %s16, 1
      %p51 = por %p49, %p50
      %p52 = scmp.ne.s32.totalorder %s44, %s47
      %p53 = scmp.eq.s32.totalorder %s16, 0
      %p54 = por %p52, %p53
      %p55 = scmp.ne.s32.totalorder %s44, %s47
      %p56 = scmp.eq.s32.totalorder %s21, 1
      %p57 = por %p55, %p56
      %p58 = scmp.ne.s32.totalorder %s47, %s48
      %p59 = scmp.eq.s32.totalorder %s21, 0
      %p60 = por %p58, %p59
      %p61 = scmp.ne.s32.totalorder %s47, %s48
      %p62 = scmp.eq.s32.totalorder %s22, 1
      %p63 = por %p61, %p62
      %p65 = scmp.ne.s32.totalorder %s48, %s64
      %p66 = scmp.eq.s32.totalorder %s22, 0
      %p67 = por %p65, %p66
      %s68 = sadd.s32 %s23, %s24
      %p69 = scmp.lt.s32.totalorder %s68, 0
      %s70 = scalar_select %p69, %s68, 0
      %s71 = sadd.s32 %s35, %s31
      %p72 = scmp.lt.s32.totalorder %s71, 0
      %s73 = scalar_select %p72, %s71, 0
      %s74 = ssub.s32 %s70, %s73
      %p75 = scmp.eq.s32.totalorder %s74, 0
      %s77 = sadd.s32 %s76, 1
      %s78 = scalar_select %p75, %s76, %s77
      %p81 = pneg %p75
      %p82 = scmp.eq.s32.totalorder %s16, 1
      %p83 = por %p81, %p82
      %p84 = scmp.ne.s32.totalorder %s76, %s79
      %p85 = scmp.eq.s32.totalorder %s16, 0
      %p86 = por %p84, %p85
      %p87 = scmp.ne.s32.totalorder %s76, %s79
      %p88 = scmp.eq.s32.totalorder %s21, 1
      %p89 = por %p87, %p88
      %p90 = scmp.ne.s32.totalorder %s79, %s80
      %p91 = scmp.eq.s32.totalorder %s21, 0
      %p92 = por %p90, %p91
      %p93 = scmp.ne.s32.totalorder %s79, %s80
      %p94 = scmp.eq.s32.totalorder %s22, 1
      %p95 = por %p93, %p94
      %p97 = scmp.ne.s32.totalorder %s80, %s96
      %p98 = scmp.eq.s32.totalorder %s22, 0
      %p99 = por %p97, %p98
      %s100 = sadd.s32 %s23, %s24
      %p101 = scmp.lt.s32.totalorder %s100, 0
      %s102 = scalar_select %p101, %s100, 0
      %s103 = sadd.s32 %s35, %s31
      %p104 = scmp.lt.s32.totalorder %s103, 0
      %s105 = scalar_select %p104, %s103, 0
      %s106 = ssub.s32 %s102, %s105
      %p107 = scmp.eq.s32.totalorder %s106, 0
      %s109 = sadd.s32 %s108, 1
      %s110 = scalar_select %p107, %s108, %s109
      %p113 = pneg %p107
      %p114 = scmp.eq.s32.totalorder %s16, 1
      %p115 = por %p113, %p114
      %p116 = scmp.ne.s32.totalorder %s108, %s111
      %p117 = scmp.eq.s32.totalorder %s16, 0
      %p118 = por %p116, %p117
      %p119 = scmp.ne.s32.totalorder %s108, %s111
      %p120 = scmp.eq.s32.totalorder %s21, 1
      %p121 = por %p119, %p120
      %p122 = scmp.ne.s32.totalorder %s111, %s112
      %p123 = scmp.eq.s32.totalorder %s21, 0
      %p124 = por %p122, %p123
      %p125 = scmp.ne.s32.totalorder %s111, %s112
      %p126 = scmp.eq.s32.totalorder %s22, 1
      %p127 = por %p125, %p126
      %p129 = scmp.ne.s32.totalorder %s112, %s128
      %p130 = scmp.eq.s32.totalorder %s22, 0
      %p131 = por %p129, %p130
      %s132 = sadd.s32 %s23, %s24
      %p133 = scmp.lt.s32.totalorder %s132, 0
      %s134 = scalar_select %p133, %s132, 0
      %s135 = sadd.s32 %s35, %s31
      %p136 = scmp.lt.s32.totalorder %s135, 0
      %s137 = scalar_select %p136, %s135, 0
      %s138 = ssub.s32 %s134, %s137
      %p139 = scmp.eq.s32.totalorder %s138, 0
      %s141 = sadd.s32 %s140, 1
      %s142 = scalar_select %p139, %s140, %s141
      %p145 = pneg %p139
      %p146 = scmp.eq.s32.totalorder %s16, 1
      %p147 = por %p145, %p146
      %p148 = scmp.ne.s32.totalorder %s140, %s143
      %p149 = scmp.eq.s32.totalorder %s16, 0
      %p150 = por %p148, %p149
      %p151 = scmp.ne.s32.totalorder %s140, %s143
      %p152 = scmp.eq.s32.totalorder %s21, 1
      %p153 = por %p151, %p152
      %p154 = scmp.ne.s32.totalorder %s143, %s144
      %p155 = scmp.eq.s32.totalorder %s21, 0
      %p156 = por %p154, %p155
      %p157 = scmp.ne.s32.totalorder %s143, %s144
      %p158 = scmp.eq.s32.totalorder %s22, 1
      %p159 = por %p157, %p158
      %p161 = scmp.ne.s32.totalorder %s144, %s160
      %p162 = scmp.eq.s32.totalorder %s22, 0
      %p163 = por %p161, %p162
      %s164 = ssub.s32 %s23, %s35
      %p165 = scmp.eq.s32.totalorder %s164, 0
      %s167 = sadd.s32 %s166, 1
      %s168 = scalar_select %p165, %s166, %s167
      %p171 = pneg %p165
      %p172 = scmp.eq.s32.totalorder %s16, 1
      %p173 = por %p171, %p172
      %p174 = scmp.ne.s32.totalorder %s166, %s169
      %p175 = scmp.eq.s32.totalorder %s16, 0
      %p176 = por %p174, %p175
      %p177 = scmp.ne.s32.totalorder %s166, %s169
      %p178 = scmp.eq.s32.totalorder %s21, 1
      %p179 = por %p177, %p178
      %p180 = scmp.ne.s32.totalorder %s169, %s170
      %p181 = scmp.eq.s32.totalorder %s21, 0
      %p182 = por %p180, %p181
      %p183 = scmp.ne.s32.totalorder %s169, %s170
      %p184 = scmp.eq.s32.totalorder %s22, 1
      %p185 = por %p183, %p184
      %p187 = scmp.ne.s32.totalorder %s170, %s186
      %p188 = scmp.eq.s32.totalorder %s22, 0
      %p189 = por %p187, %p188
      %p190 = scmp.le.s32.totalorder 1, %s16
      %p191 = scmp.lt.s32.totalorder %s16, 3
      %p192 = pnand %p190, %p191
      %p193 = pneg %p192
      // Predicated region
      $region9: #{tpu_custom_call.1} parent=5 // pred_check
        _
      $region10: #{tpu_custom_call.1} parent=5 // pred_check_branch
        %195 = sbr.rel (%p192) target = $region12
      $region11: #{tpu_custom_call.1} parent=5 // pred_region
        %s196 = ssub.s32 %s16, 1
      $region12: #{tpu_custom_call.1} parent=5 // pred_fallthru
        _
      %p197 = scmp.lt.s32.totalorder %s16, 2
      // Predicated region
      $region13: #{tpu_custom_call.1} parent=5 // pred_check
        %p198 = pneg %p197
      $region14: #{tpu_custom_call.1} parent=5 // pred_check_branch
        %200 = sbr.rel (%p198) target = $region16
      $region15: #{tpu_custom_call.1} parent=5 // pred_region
        // Predicated region
        $region17: #{tpu_custom_call.1} parent=15 // pred_check
          %p201 = pneg %p54
        $region18: #{tpu_custom_call.1} parent=15 // pred_check_branch
          %203 = sbr.rel (%p201) target = $region20
        $region19: #{tpu_custom_call.1} parent=15 // pred_region
          %s204 = sand.u32 %s44, 1
          %s205 = scalar_lea.sflag [#allocation5], %s204
          %s206 = sand.u32 %s44, 1
          %s207 = smul.addr %s206, 4
          %s208 = scalar_lea.vmem [#allocation4], %s207
          %s209 = sadd.s32 %s23, %s24
          %p210 = scmp.lt.s32.totalorder %s209, 0
          %s211 = scalar_select %p210, %s209, 0
          %s213 = ssub.s32 64, 64
          %214 = vsyncadd %s205, %s213
          %s215 = smul.addr %s211, 2
          %s216 = smul.addr %s215, 32
          %s217 = scalar_lea.hbm %s0, %s216
          %s219 = sshll.u32 %s208, 4
          %s220 = int_to_ptr.vmem [resolvable:$true] %s219
          %222 = dma.hbm_to_vmem [thread:$0]  %s217, 64, %s220, %s205
        $region20: #{tpu_custom_call.1} parent=15 // pred_fallthru
          _
        // Predicated region
        $region21: #{tpu_custom_call.1} parent=15 // pred_check
          %p223 = pneg %p86
        $region22: #{tpu_custom_call.1} parent=15 // pred_check_branch
          %225 = sbr.rel (%p223) target = $region24
        $region23: #{tpu_custom_call.1} parent=15 // pred_region
          %s226 = sadd.s32 %s23, %s24
          %p227 = scmp.lt.s32.totalorder %s226, 0
          %s228 = scalar_select %p227, %s226, 0
          %p229 = scmp.lt.s32.totalorder %s228, 0
          %s230 = scalar_select %p229, %s228, 0
          %s231 = smul.addr %s230, 2
          %s232 = smul.addr %s231, 2
          %s233 = scalar_lea.vmem %s1, %s232
          %s234 = sadd.s32 %s23, %s24
          %p235 = scmp.lt.s32.totalorder %s234, 0
          %s236 = scalar_select %p235, %s234, 0
        $region24: #{tpu_custom_call.1} parent=15 // pred_fallthru
          _
        // Predicated region
        $region25: #{tpu_custom_call.1} parent=15 // pred_check
          %p237 = pneg %p118
        $region26: #{tpu_custom_call.1} parent=15 // pred_check_branch
          %239 = sbr.rel (%p237) target = $region28
        $region27: #{tpu_custom_call.1} parent=15 // pred_region
          %s240 = sadd.s32 %s23, %s24
          %p241 = scmp.lt.s32.totalorder %s240, 0
          %s242 = scalar_select %p241, %s240, 0
          %p243 = scmp.lt.s32.totalorder %s242, 0
          %s244 = scalar_select %p243, %s242, 0
          %s245 = smul.addr %s244, 2
          %s246 = scalar_lea.vmem %s2, %s245
          %s247 = sadd.s32 %s23, %s24
          %p248 = scmp.lt.s32.totalorder %s247, 0
          %s249 = scalar_select %p248, %s247, 0
        $region28: #{tpu_custom_call.1} parent=15 // pred_fallthru
          _
        // Predicated region
        $region29: #{tpu_custom_call.1} parent=15 // pred_check
          %p250 = pneg %p150
        $region30: #{tpu_custom_call.1} parent=15 // pred_check_branch
          %252 = sbr.rel (%p250) target = $region32
        $region31: #{tpu_custom_call.1} parent=15 // pred_region
          %s253 = sadd.s32 %s23, %s24
          %p254 = scmp.lt.s32.totalorder %s253, 0
          %s255 = scalar_select %p254, %s253, 0
          %p256 = scmp.lt.s32.totalorder %s255, 0
          %s257 = scalar_select %p256, %s255, 0
          %s258 = smul.addr %s257, 2
          %s259 = scalar_lea.vmem %s3, %s258
          %s260 = sadd.s32 %s23, %s24
          %p261 = scmp.lt.s32.totalorder %s260, 0
          %s262 = scalar_select %p261, %s260, 0
        $region32: #{tpu_custom_call.1} parent=15 // pred_fallthru
          _
      $region16: #{tpu_custom_call.1} parent=5 // pred_fallthru
        _
      %p263 = scmp.le.s32.totalorder 1, %s16
      %p264 = scmp.lt.s32.totalorder %s16, 3
      %p265 = pnand %p263, %p264
      %p266 = pneg %p265
      // Predicated region
      $region33: #{tpu_custom_call.1} parent=5 // pred_check
        _
      $region34: #{tpu_custom_call.1} parent=5 // pred_check_branch
        %268 = sbr.rel (%p265) target = $region36
      $region35: #{tpu_custom_call.1} parent=5 // pred_region
        %s269 = ssub.s32 %s16, 1
        %s270 = sand.u32 %s47, 1
        %s271 = scalar_lea.sflag [#allocation5], %s270
        %s272 = sand.u32 %s47, 1
        %s273 = smul.addr %s272, 4
        %s274 = scalar_lea.vmem [#allocation4], %s273
        // Predicated region
        $region37: #{tpu_custom_call.1} parent=35 // pred_check
          %p275 = pneg %p60
        $region38: #{tpu_custom_call.1} parent=35 // pred_check_branch
          %277 = sbr.rel (%p275) target = $region40
        $region39: #{tpu_custom_call.1} parent=35 // pred_region
          %278 = dma.done %s271, 64
        $region40: #{tpu_custom_call.1} parent=35 // pred_fallthru
          _
        %s279 = sand.u32 %s47, 1
        %s280 = scalar_lea.sflag [#allocation5], %s279
        %s281 = sand.u32 %s47, 1
        %s282 = smul.addr %s281, 4
        %s283 = scalar_lea.vmem [#allocation4], %s282
        %p284 = pneg %p60
        %p285 = pneg %p57
        %s286 = sadd.s32 %s25, %s26
        %p287 = scmp.lt.s32.totalorder %s286, 0
        %s288 = scalar_select %p287, %s286, 0
        %p289 = scmp.lt.s32.totalorder %s288, 0
        %s290 = scalar_select %p289, %s288, 0
        %s291 = smul.addr %s290, 2
        %s292 = smul.addr %s291, 2
        %s293 = scalar_lea.vmem %s1, %s292
        %p294 = pneg %p92
        %p295 = pneg %p89
        %s296 = sadd.s32 %s25, %s26
        %p297 = scmp.lt.s32.totalorder %s296, 0
        %s298 = scalar_select %p297, %s296, 0
        %p299 = scmp.lt.s32.totalorder %s298, 0
        %s300 = scalar_select %p299, %s298, 0
        %s301 = smul.addr %s300, 2
        %s302 = scalar_lea.vmem %s2, %s301
        %p303 = pneg %p124
        %p304 = pneg %p121
        %s305 = sadd.s32 %s25, %s26
        %p306 = scmp.lt.s32.totalorder %s305, 0
        %s307 = scalar_select %p306, %s305, 0
        %p308 = scmp.lt.s32.totalorder %s307, 0
        %s309 = scalar_select %p308, %s307, 0
        %s310 = smul.addr %s309, 2
        %s311 = scalar_lea.vmem %s3, %s310
        %p312 = pneg %p156
        %p313 = pneg %p153
        %p314 = pneg %p182
        %p315 = pneg %p179
        %s316 = sand.u32 %s169, 1
        %s317 = scalar_lea.sflag [#allocation6], %s316
        %s318 = sand.u32 %s169, 1
        %s319 = smul.addr %s318, 8
        %s320 = scalar_lea.vmem [#allocation7], %s319
        %s321 = sadd.s32 %s25, %s26
        %p322 = scmp.lt.s32.totalorder %s321, 0
        %s323 = scalar_select %p322, %s321, 0
        %s324 = sadd.s32 %s25, %s26
        %p325 = scmp.lt.s32.totalorder %s324, 0
        %s326 = scalar_select %p325, %s324, 0
        %p327 = scmp.lt.s32.totalorder %s326, 0
        %s328 = scalar_select %p327, %s326, 0
        %s329 = smul.addr %s328, 2
        %s330 = smul.addr %s329, 2
        %s331 = scalar_lea.vmem %s1, %s330
        %s332 = sadd.s32 %s25, %s26
        %p333 = scmp.lt.s32.totalorder %s332, 0
        %s334 = scalar_select %p333, %s332, 0
        %s335 = sadd.s32 %s25, %s26
        %p336 = scmp.lt.s32.totalorder %s335, 0
        %s337 = scalar_select %p336, %s335, 0
        %p338 = scmp.lt.s32.totalorder %s337, 0
        %s339 = scalar_select %p338, %s337, 0
        %s340 = smul.addr %s339, 2
        %s341 = scalar_lea.vmem %s2, %s340
        %s342 = sadd.s32 %s25, %s26
        %p343 = scmp.lt.s32.totalorder %s342, 0
        %s344 = scalar_select %p343, %s342, 0
        %s345 = sadd.s32 %s25, %s26
        %p346 = scmp.lt.s32.totalorder %s345, 0
        %s347 = scalar_select %p346, %s345, 0
        %p348 = scmp.lt.s32.totalorder %s347, 0
        %s349 = scalar_select %p348, %s347, 0
        %s350 = smul.addr %s349, 2
        %s351 = scalar_lea.vmem %s3, %s350
        %s352 = sadd.s32 %s25, %s26
        %p353 = scmp.lt.s32.totalorder %s352, 0
        %s354 = scalar_select %p353, %s352, 0
        %p355 = scmp.eq.s32.totalorder %s26, 0
        // Predicated region
        $region41: #{tpu_custom_call.1} parent=35 // pred_check
          %p356 = pneg %p355
        $region42: #{tpu_custom_call.1} parent=35 // pred_check_branch
          %358 = sbr.rel (%p356) target = $region44
        $region43: #{tpu_custom_call.1} parent=35 // pred_region
          %vm359 = vcmask 0
          %360 = vst.msk [vmem:[#allocation2] sm:$0x1] %vm359, 0.0
          %361 = vst.msk [vmem:[#allocation3] sm:$0x1] %vm359, 0.0
        $region44: #{tpu_custom_call.1} parent=35 // pred_fallthru
          _
        %v362 = vld [vmem:[%s274] sm:$0xf]
        %v363 = vld [vmem:[%s331] sm:$0xf]
        %s364 = sadd.s32 %s25, %s26
        %s365 = smul.u32 %s364, 2
        %v366 = vlaneseq
        %v367 = vshrl.u32 %v366, 7
        %v368 = vstv %s365
        %v369 = vadd.s32 %v368, %v367
        %vm370 = vcmp.lt.s32.totalorder %v369, 2
        %v371 = vmul.f32 %v362, %v362
        %v374 = vunpack.c.l.s4 1983009808
        %v375 = vunpack.c.0.s8 %v374
        %v376 = vlaneseq
        %v377 = vshrl.u32 %v376, 7
        %v378 = vsub.s32 %v375, %v377
        %v379 = vrot.slane %v371, %v378
        %v380 = vcombine.high %v379, %v379
        %vm383 = vcmask 1041408
        %v384 = vsel %vm383, %v379, 0.0
        %v385 = vsel %vm383, %v380, 0.0
        %v386 = vadd.f32 %v384, %v385
        %387 = vadd.xlane.f32.xlu0 %v386
        %v388 = vpop.xlane.xlu0 %387
        %v389 = vmax.f32 %v388, 1e-24
        %v390 = vrsqrt.pop %v389
        %v391 = vmul.f32 %v363, %v363
        %v394 = vunpack.c.l.s4 1983009808
        %v395 = vunpack.c.0.s8 %v394
        %v396 = vlaneseq
        %v397 = vshrl.u32 %v396, 7
        %v398 = vsub.s32 %v395, %v397
        %v399 = vrot.slane %v391, %v398
        %v400 = vcombine.high %v399, %v399
        %v403 = vsel %vm383, %v399, 0.0
        %v404 = vsel %vm383, %v400, 0.0
        %v405 = vadd.f32 %v403, %v404
        %406 = vadd.xlane.f32.xlu0 %v405
        %v407 = vpop.xlane.xlu0 %406
        %v408 = vmax.f32 %v407, 1e-24
        %v409 = vrsqrt.pop %v408
        %v412 = vunpack.c.l.s4 269488144
        %v413 = vunpack.c.0.s8 %v412
        %v414 = vlaneseq
        %v415 = vshrl.u32 %v414, 7
        %v416 = vsub.s32 %v413, %v415
        %v417 = vrot.slane %v409, %v416
        %v419 = vmul.f32 %v363, %v417
        %v422 = vunpack.c.l.s4 269488144
        %v423 = vunpack.c.0.s8 %v422
        %v424 = vlaneseq
        %v425 = vshrl.u32 %v424, 7
        %v426 = vsub.s32 %v423, %v425
        %v427 = vrot.slane %v390, %v426
        %v429 = vmul.f32 %v362, %v427
        %v430 = vsub.f32 %v419, %v429
        %v431 = vand.u32 2147483647, %v430
        %v434 = vunpack.c.l.s4 1983009808
        %v435 = vunpack.c.0.s8 %v434
        %v436 = vlaneseq
        %v437 = vshrl.u32 %v436, 7
        %v438 = vsub.s32 %v435, %v437
        %v439 = vrot.slane %v431, %v438
        %v440 = vcombine.high %v439, %v439
        %v443 = vsel %vm383, %v439, 0.0
        %v444 = vsel %vm383, %v440, 0.0
        %v445 = vadd.f32 %v443, %v444
        %446 = vadd.xlane.f32.xlu0 %v445
        %v447 = vpop.xlane.xlu0 %446
        %v448 = vld [vmem:[#allocation2] sm:$0x1]
        %v449 = vsel %vm370, %v447, 0.0
        %v450 = vsel %vm383, %v449, 0.0
        %v451 = vrot.slane %v450, 4
        %v452 = vadd.f32 %v450, %v451
        %v453 = vrot.slane %v452, 2
        %v454 = vadd.f32 %v452, %v453
        %v455 = vrot.slane %v454, 1
        %v456 = vadd.f32 %v454, %v455
        %v457 = vadd.f32 %v448, %v456
        %vm458 = vcmask 0
        %459 = vst.msk [vmem:[#allocation2] sm:$0x1] %vm458, %v457
        %v460 = vld [vmem:[%s341] sm:$0x3]
        %v461 = vld [vmem:[%s351] sm:$0x3]
        %vm462 = vcmask 74752
        %v463 = vsel %vm462, %v460, -inf
        %464 = vmax.xlane.f32.xlu0 %v463
        %v465 = vpop.xlane.xlu0 %464
        %v466 = vsub.f32 %v460, %v465
        %v467 = vmul.f32 %v466, 1.442695
        %v468 = vpow.pop %v467
        %v469 = vsel %vm462, %v468, 0.0
        %470 = vadd.xlane.f32.xlu0 %v469
        %v471 = vpop.xlane.xlu0 %470
        %v472 = vlog2.pop %v471
        %v473 = vmul.f32 %v472, 0.6931472
        %v474 = vlaneseq
        %v475 = vand.u32 %v474, 127
        %476 = vset.pattern.permute.xlu0 0
        %477 = vperm.xlu0 %476, %v461
        %v478 = vpop.permute.xlu0 %477
        %vm479 = vcmp.eq.s32.totalorder %v475, %v478
        %v480 = vsel %vm479, %v466, 0.0
        %v481 = vsel %vm462, %v480, 0.0
        %482 = vadd.xlane.f32.xlu0 %v481
        %v483 = vpop.xlane.xlu0 %482
        %v484 = vsub.f32 %v473, %v483
        %v485 = vld [vmem:[#allocation3] sm:$0x1]
        %v486 = vsel %vm370, %v484, 0.0
        %v487 = vsel %vm383, %v486, 0.0
        %v488 = vrot.slane %v487, 4
        %v489 = vadd.f32 %v487, %v488
        %v490 = vrot.slane %v489, 2
        %v491 = vadd.f32 %v489, %v490
        %v492 = vrot.slane %v491, 1
        %v493 = vadd.f32 %v491, %v492
        %v494 = vadd.f32 %v485, %v493
        %495 = vst.msk [vmem:[#allocation3] sm:$0x1] %vm458, %v494
        // Predicated region
        $region45: #{tpu_custom_call.1} parent=35 // pred_check
          %p496 = pneg %p355
        $region46: #{tpu_custom_call.1} parent=35 // pred_check_branch
          %498 = sbr.rel (%p496) target = $region48
        $region47: #{tpu_custom_call.1} parent=35 // pred_region
          %vm499 = vcmp.eq.s32.totalorder %v367, 0
          %vm500 = vcmp.eq.s32.totalorder %v475, 0
          %vm501 = vmand %vm499, %vm500
          %v502 = vld [vmem:[#allocation3] sm:$0x1]
          %s503 = vtos %v502
          %vm504 = vcmp.eq.s32.totalorder %v475, 1
          %vm505 = vmand %vm499, %vm504
          %v506 = vld [vmem:[#allocation2] sm:$0x1]
          %s507 = vtos %v506
          %v508 = vstv %s507
          %v509 = vsel %vm505, %v508, 0.0
          %v510 = vstv %s503
          %v511 = vsel %vm501, %v510, %v509
          %512 = vst [vmem:[%s320] sm:$0xff] %v511
        $region48: #{tpu_custom_call.1} parent=35 // pred_fallthru
          _
        %s513 = sand.u32 %s169, 1
        %s514 = scalar_lea.sflag [#allocation6], %s513
        %s515 = sand.u32 %s169, 1
        %s516 = smul.addr %s515, 8
        %s517 = scalar_lea.vmem [#allocation7], %s516
        // Predicated region
        $region49: #{tpu_custom_call.1} parent=35 // pred_check
          %p518 = pneg %p179
        $region50: #{tpu_custom_call.1} parent=35 // pred_check_branch
          %520 = sbr.rel (%p518) target = $region52
        $region51: #{tpu_custom_call.1} parent=35 // pred_region
          %s522 = ssub.s32 128, 128
          %523 = vsyncadd %s514, %s522
          %s524 = smul.addr %s25, 128
          %s525 = scalar_lea.hbm %s4, %s524
          %s527 = sshll.u32 %s517, 4
          %s528 = int_to_ptr.vmem [resolvable:$true] %s527
          %530 = dma.vmem_to_hbm [thread:$0]  %s528, 128, %s525, %s514
        $region52: #{tpu_custom_call.1} parent=35 // pred_fallthru
          _
      $region36: #{tpu_custom_call.1} parent=5 // pred_fallthru
        _
      %p531 = scmp.le.s32.totalorder 2, %s16
      // Predicated region
      $region53: #{tpu_custom_call.1} parent=5 // pred_check
        %p532 = pneg %p531
      $region54: #{tpu_custom_call.1} parent=5 // pred_check_branch
        %534 = sbr.rel (%p532) target = $region56
      $region55: #{tpu_custom_call.1} parent=5 // pred_region
        %s535 = ssub.s32 %s16, 2
        // Predicated region
        $region57: #{tpu_custom_call.1} parent=55 // pred_check
          %p536 = pneg %p185
        $region58: #{tpu_custom_call.1} parent=55 // pred_check_branch
          %538 = sbr.rel (%p536) target = $region60
        $region59: #{tpu_custom_call.1} parent=55 // pred_region
          %s539 = sand.u32 %s170, 1
          %s540 = scalar_lea.sflag [#allocation6], %s539
          %s541 = sand.u32 %s170, 1
          %s542 = smul.addr %s541, 8
          %s543 = scalar_lea.vmem [#allocation7], %s542
          %544 = dma.done %s540, 128
        $region60: #{tpu_custom_call.1} parent=55 // pred_fallthru
          _
      $region56: #{tpu_custom_call.1} parent=5 // pred_fallthru
        _
    $region6: #{tpu_custom_call.1} parent=1 // loop_footer
      %s20 = sadd.s32 1, %s16
    $region7: #{tpu_custom_call.1} parent=1 // loop_footer_branch
      %15 = sbr.rel target = $region3
    $region8: #{tpu_custom_call.1} parent=1 // loop_exit
      _
    %545 = vsyncpa [#allocation5], 1
    %s546 = scalar_lea.sflag [#allocation5], 1
    %547 = vsyncpa %s546, 1
    %548 = vsyncpa [#allocation6], 1
    %s549 = scalar_lea.sflag [#allocation6], 1
    %550 = vsyncpa %s549, 1

</llo_original>
